<compile_context>
chip_gen: v7x
topology: tpu7x:2x2x1
jax: 0.10.0
libtpu: 0.0.40
codegen_flags: <defaults>
</compile_context>

<pallas_src>
import jax
import jax.numpy as jnp
from jax.experimental import pallas as pl
from jax.experimental.pallas import tpu as pltpu


def attention_kernel(z_ref, w1_ref, b1_ref, w2_ref, out_ref, beta_ref):
    tb, n, d = z_ref.shape
    z3 = z_ref[...]                                   # (TB, N, D), f32

    # Fold (batch_tile, N) into the M dimension of the first matmul.  With N a
    # multiple of 8 this merge of leading dims is layout-preserving (no relayout).
    z2 = z3.reshape(tb * n, d)

    # Linear(in_size, hidden) + Tanh — one MXU matmul with M = TB*N rows, f32 accumulate;
    # tanh goes to the EUP slot (free relative to the VALU).
    h = jnp.tanh(
        jnp.dot(z2, w1_ref[...], preferred_element_type=jnp.float32) + b1_ref[...]
    )                                                 # (TB*N, H)

    # Linear(hidden, 1, bias=False) as VPU multiply + lane reduce (XLU slot),
    # avoiding a 1-wide MXU matmul: w2 is a (1, H) row.
    logits = jnp.sum(h * w2_ref[...], axis=-1, keepdims=True)       # (TB*N, 1)
    logits = logits.reshape(tb, n, 1)                 # split leading dim: layout-preserving

    # Per-sample softmax over the N axis (== torch.softmax(w, dim=0) for each sample).
    m = jnp.max(logits, axis=1, keepdims=True)                      # (TB, 1, 1)
    e = jnp.exp(logits - m)                                         # (TB, N, 1)  (EUP)
    denom = jnp.sum(e, axis=1, keepdims=True)                       # (TB, 1, 1)
    beta = e * pl.reciprocal(denom, approx=False)   # exact: keep sum(beta)=1 within 1e-5

    beta_ref[...] = beta.astype(beta_ref.dtype)                     # (TB, N, 1)
    out_ref[...] = (beta * z3).astype(out_ref.dtype)                # (TB, N, D)


def attention_forward(z, w1, b1, w2, *, batch_tile=None):
    """DNFSA-DDI Attention forward.

    z : (N, in_size) — original module signature — or (B, N, in_size) for a batch of
        independent module invocations.  Softmax runs over the N axis of each sample
        (PyTorch `dim=0`).  Returns (beta * z, beta).
    """
    squeeze = z.ndim == 2
    if squeeze:
        z = z[None]
    B, N, D = z.shape
    H = w1.shape[1]
    assert w1.shape == (D, H)
    b1 = jnp.asarray(b1).reshape(1, H)
    w2_row = jnp.asarray(w2).reshape(1, H)   # (1, H) row => VPU mul + lane reduce in kernel

    if batch_tile is None:
        # Aim for >= 256 M-rows per grid step (fills the 256-wide MXU on v6e/v7x)
        # while keeping the per-step VMEM footprint tiny (<< 32 MiB), and leaving
        # >= 2 grid steps when possible so the batch axis can shard across cores.
        batch_tile = min(B, max(1, 256 // max(N, 1)))
    grid = (pl.cdiv(B, batch_tile),)

    out, beta = pl.pallas_call(
        attention_kernel,
        out_shape=(
            jax.ShapeDtypeStruct((B, N, D), z.dtype),
            jax.ShapeDtypeStruct((B, N, 1), jnp.float32),
        ),
        grid=grid,
        in_specs=[
            pl.BlockSpec((batch_tile, N, D), lambda b: (b, 0, 0)),
            # Weights / bias: constant index_map -> stay VMEM-resident across the grid.
            pl.BlockSpec((D, H), lambda b: (0, 0)),
            pl.BlockSpec((1, H), lambda b: (0, 0)),
            pl.BlockSpec((1, H), lambda b: (0, 0)),
        ],
        out_specs=(
            pl.BlockSpec((batch_tile, N, D), lambda b: (b, 0, 0)),
            pl.BlockSpec((batch_tile, N, 1), lambda b: (b, 0, 0)),
        ),
        compiler_params=pltpu.CompilerParams(
            dimension_semantics=("parallel",),      # batch axis shards over 2 TCs on v7x
            vmem_limit_bytes=32 * 1024 * 1024,      # explicit cap, safe on v7x (64 MiB VMEM)
        ),
    )(z, w1, b1, w2_row)

    if squeeze:
        return out[0], beta[0]
    return out, beta


def reference_forward(z, w1, b1, w2):
    b1 = jnp.asarray(b1).reshape(1, -1)
    w2_col = jnp.asarray(w2).reshape(-1, 1)
    w = jnp.tanh(z @ w1 + b1) @ w2_col          # (..., N, 1)
    beta = jax.nn.softmax(w, axis=-2)           # softmax over the N axis (torch dim=0)
    return beta * z, beta


if __name__ == "__main__":
    B, N, in_size, hidden = 64, 8, 32, 32

    key = jax.random.PRNGKey(0)
    kz, k1, kb, k2 = jax.random.split(key, 4)

    # Deterministic synthetic parameters (PyTorch-style uniform fan-in scaling).
    z = jax.random.normal(kz, (B, N, in_size), dtype=jnp.float32)
    bound1 = 1.0 / (in_size ** 0.5)
    w1 = jax.random.uniform(k1, (in_size, hidden), jnp.float32, -bound1, bound1)
    b1 = jax.random.uniform(kb, (hidden,), jnp.float32, -bound1, bound1)
    bound2 = 1.0 / (hidden ** 0.5)
    w2 = jax.random.uniform(k2, (hidden,), jnp.float32, -bound2, bound2)

    # Batched path: one pallas_call covers all B independent module invocations.
    out, beta = attention_forward(z, w1, b1, w2)
    jax.block_until_ready((out, beta))

    out_ref, beta_ref = reference_forward(z, w1, b1, w2)
    assert out.shape == (B, N, in_size) and beta.shape == (B, N, 1)
    assert jnp.allclose(out, out_ref, atol=1e-5, rtol=1e-5)
    assert jnp.allclose(beta, beta_ref, atol=1e-5, rtol=1e-5)
    assert jnp.allclose(jnp.sum(beta, axis=1), 1.0, atol=1e-5)

    # Single-sample path (exact original call signature: z of shape (N, in_size)).
    out1, beta1 = attention_forward(z[0], w1, b1, w2)
    jax.block_until_ready((out1, beta1))
    assert out1.shape == (N, in_size) and beta1.shape == (N, 1)
    assert jnp.allclose(out1, out_ref[0], atol=1e-5, rtol=1e-5)
    assert jnp.allclose(beta1, beta_ref[0], atol=1e-5, rtol=1e-5)

    print("KERNEL_OK")
</pallas_src>

<mosaic_0001>
module attributes {stable_mosaic.version = 11 : i64} {
  func.func @attention_kernel(%arg0: i32, %arg1: memref<32x8x32xf32, #tpu.memory_space<vmem>>, %arg2: memref<32x32xf32, #tpu.memory_space<vmem>>, %arg3: memref<1x32xf32, #tpu.memory_space<vmem>>, %arg4: memref<1x32xf32, #tpu.memory_space<vmem>>, %arg5: memref<32x8x32xf32, #tpu.memory_space<vmem>>, %arg6: memref<32x8x1xf32, #tpu.memory_space<vmem>>) attributes {dimension_semantics = [#tpu.dimension_semantics<parallel>], iteration_bounds = array<i64: 2>, scalar_prefetch = 0 : i64, scratch_operands = 0 : i64, tpu.core_type = #tpu.core_type<tc>, window_params = [{transform_indices = @transform_0, window_bounds = array<i64: 32, 8, 32>}, {pipeline_mode = #tpu.pipeline_mode<synchronous>, transform_indices = @transform_1, window_bounds = array<i64: 32, 32>}, {pipeline_mode = #tpu.pipeline_mode<synchronous>, transform_indices = @transform_2, window_bounds = array<i64: 1, 32>}, {pipeline_mode = #tpu.pipeline_mode<synchronous>, transform_indices = @transform_3, window_bounds = array<i64: 1, 32>}, {transform_indices = @transform_4, window_bounds = array<i64: 32, 8, 32>}, {transform_indices = @transform_5, window_bounds = array<i64: 32, 8, 1>}]} {
    %c0 = arith.constant 0 : index
    %c0_0 = arith.constant 0 : index
    %c0_1 = arith.constant 0 : index
    %0 = vector.load %arg1[%c0, %c0_0, %c0_1] : memref<32x8x32xf32, #tpu.memory_space<vmem>>, vector<32x8x32xf32>
    %1 = vector.shape_cast %0 : vector<32x8x32xf32> to vector<256x32xf32>
    %c0_2 = arith.constant 0 : index
    %c0_3 = arith.constant 0 : index
    %2 = vector.load %arg2[%c0_2, %c0_3] : memref<32x32xf32, #tpu.memory_space<vmem>>, vector<32x32xf32>
    %cst = arith.constant dense<0.000000e+00> : vector<256x32xf32>
    %3 = tpu.matmul %1, %2, %cst {dimension_numbers = #tpu.dot_dimension_numbers<[1], [0], [0], [1], [0, 0, 1, 1], [], []>} : vector<256x32xf32>, vector<32x32xf32>, vector<256x32xf32> -> vector<256x32xf32>
    %c0_4 = arith.constant 0 : index
    %c0_5 = arith.constant 0 : index
    %4 = vector.load %arg3[%c0_4, %c0_5] : memref<1x32xf32, #tpu.memory_space<vmem>>, vector<1x32xf32>
    %5 = vector.broadcast %4 : vector<1x32xf32> to vector<256x32xf32>
    %6 = arith.addf %3, %5 : vector<256x32xf32>
    %7 = math.tanh %6 : vector<256x32xf32>
    %c0_6 = arith.constant 0 : index
    %c0_7 = arith.constant 0 : index
    %8 = vector.load %arg4[%c0_6, %c0_7] : memref<1x32xf32, #tpu.memory_space<vmem>>, vector<1x32xf32>
    %9 = vector.broadcast %8 : vector<1x32xf32> to vector<256x32xf32>
    %10 = arith.mulf %7, %9 : vector<256x32xf32>
    %cst_8 = arith.constant dense<0.000000e+00> : vector<256xf32>
    %11 = vector.multi_reduction <add>, %10, %cst_8 [1] : vector<256x32xf32> to vector<256xf32>
    %12 = vector.shape_cast %11 : vector<256xf32> to vector<256x1xf32>
    %13 = vector.shape_cast %12 : vector<256x1xf32> to vector<32x8x1xf32>
    %cst_9 = arith.constant dense<0xFF800000> : vector<32x1xf32>
    %14 = vector.multi_reduction <maximumf>, %13, %cst_9 [1] : vector<32x8x1xf32> to vector<32x1xf32>
    %15 = vector.shape_cast %14 : vector<32x1xf32> to vector<32x1x1xf32>
    %16 = vector.broadcast %15 : vector<32x1x1xf32> to vector<32x8x1xf32>
    %17 = arith.subf %13, %16 : vector<32x8x1xf32>
    %18 = math.exp %17 : vector<32x8x1xf32>
    %cst_10 = arith.constant dense<0.000000e+00> : vector<32x1xf32>
    %19 = vector.multi_reduction <add>, %18, %cst_10 [1] : vector<32x8x1xf32> to vector<32x1xf32>
    %20 = vector.shape_cast %19 : vector<32x1xf32> to vector<32x1x1xf32>
    %21 = tpu.reciprocal %20 : vector<32x1x1xf32> -> vector<32x1x1xf32>
    %22 = vector.broadcast %21 : vector<32x1x1xf32> to vector<32x8x1xf32>
    %23 = arith.mulf %18, %22 : vector<32x8x1xf32>
    %c0_11 = arith.constant 0 : index
    %c0_12 = arith.constant 0 : index
    %c0_13 = arith.constant 0 : index
    %24 = vector.load %arg6[%c0_11, %c0_12, %c0_13] : memref<32x8x1xf32, #tpu.memory_space<vmem>>, vector<32x8x1xf32>
    tpu.vector_store %arg6[%c0_11, %c0_12, %c0_13], %23 {strides = array<i32>} : memref<32x8x1xf32, #tpu.memory_space<vmem>>, vector<32x8x1xf32>,
    %25 = vector.broadcast %23 : vector<32x8x1xf32> to vector<32x8x32xf32>
    %26 = arith.mulf %25, %0 : vector<32x8x32xf32>
    %c0_14 = arith.constant 0 : index
    %c0_15 = arith.constant 0 : index
    %c0_16 = arith.constant 0 : index
    %27 = vector.load %arg5[%c0_14, %c0_15, %c0_16] : memref<32x8x32xf32, #tpu.memory_space<vmem>>, vector<32x8x32xf32>
    tpu.vector_store %arg5[%c0_14, %c0_15, %c0_16], %26 {strides = array<i32>} : memref<32x8x32xf32, #tpu.memory_space<vmem>>, vector<32x8x32xf32>,
    return
  }
  func.func @transform_0(%arg0: i32) -> (i32, i32, i32) {
    %c0_i32 = arith.constant 0 : i32
    %c0_i32_0 = arith.constant 0 : i32
    %c0_i32_1 = arith.constant 0 : i32
    return %arg0, %c0_i32, %c0_i32_0 : i32, i32, i32
  }
  func.func @transform_1(%arg0: i32) -> (i32, i32) {
    %c0_i32 = arith.constant 0 : i32
    %c0_i32_0 = arith.constant 0 : i32
    %c0_i32_1 = arith.constant 0 : i32
    return %c0_i32, %c0_i32_0 : i32, i32
  }
  func.func @transform_2(%arg0: i32) -> (i32, i32) {
    %c0_i32 = arith.constant 0 : i32
    %c0_i32_0 = arith.constant 0 : i32
    %c0_i32_1 = arith.constant 0 : i32
    return %c0_i32, %c0_i32_0 : i32, i32
  }
  func.func @transform_3(%arg0: i32) -> (i32, i32) {
    %c0_i32 = arith.constant 0 : i32
    %c0_i32_0 = arith.constant 0 : i32
    %c0_i32_1 = arith.constant 0 : i32
    return %c0_i32, %c0_i32_0 : i32, i32
  }
  func.func @transform_4(%arg0: i32) -> (i32, i32, i32) {
    %c0_i32 = arith.constant 0 : i32
    %c0_i32_0 = arith.constant 0 : i32
    %c0_i32_1 = arith.constant 0 : i32
    return %arg0, %c0_i32, %c0_i32_0 : i32, i32, i32
  }
  func.func @transform_5(%arg0: i32) -> (i32, i32, i32) {
    %c0_i32 = arith.constant 0 : i32
    %c0_i32_0 = arith.constant 0 : i32
    %c0_i32_1 = arith.constant 0 : i32
    return %arg0, %c0_i32, %c0_i32_0 : i32, i32, i32
  }
}

</mosaic_0001>

<llo_original>
// kernel: tpu_custom_call.1
$region0: #{tpu_custom_call.1}
  #allocation0 [shape = 'u32[]', space=smem, size = 0x4, offset = 0x4, fixed_abs, tag = 'smem constant byte address 0x4 - core index']
  #allocation1 [shape = 'u32[144,128]{1,0:T(1,128)}', space=vmem, size = 0x12000, scoped, tag = 'internal scratch']
  %s0 = inlined_call_operand.vmem [shape: f32[64,8,32], index: 0, kind: input, shape index: {}]
  %s1 = inlined_call_operand.vmem [shape: f32[32,32], index: 1, kind: input, shape index: {}]
  %s2 = inlined_call_operand.vmem [shape: f32[1,32], index: 2, kind: input, shape index: {}]
  %s3 = inlined_call_operand.vmem [shape: f32[1,32], index: 3, kind: input, shape index: {}]
  %s4 = inlined_call_operand.vmem [shape: f32[64,8,32], index: 4, kind: output, shape index: {0}]
  %s5 = inlined_call_operand.vmem [shape: f32[64,8,1], index: 5, kind: output, shape index: {1}]
  %6 = xla_tuple %s4, %s5
  %s7 = sld [smem:[#allocation0]]
  $region57: #{tpu_custom_call.1} parent=0
    _
  %s9 = ssub.s32 1, %s7
  %s10 = scalar_select 0, %s9, %s7
  loop: start=0, step=1, limit=4
  $region2: #{tpu_custom_call.1} parent=0 // loop_pre_header
    _
  $region3: #{tpu_custom_call.1} parent=0 // loop_header
    %s12 = sphi 0, %s16
    %p13 = scmp.ge.s32.totalorder %s12, 4
    %s22 = sphi 0, %s24
    %s25 = sphi 0, %s22
    %s26 = sphi 0, %s25
    %s42 = sphi 0, %s26
    %s46 = sphi 0, %s46
    %s48 = sphi 0, %s46
    %s49 = sphi 0, %s48
    %s63 = sphi 0, %s49
    %s67 = sphi 0, %s67
    %s69 = sphi 0, %s67
    %s70 = sphi 0, %s69
    %s84 = sphi 0, %s70
    %s88 = sphi 0, %s88
    %s90 = sphi 0, %s88
    %s91 = sphi 0, %s90
    %s105 = sphi 0, %s91
    %s111 = sphi 0, %s113
    %s114 = sphi 0, %s111
    %s115 = sphi 0, %s114
    %s131 = sphi 0, %s115
    %s137 = sphi 0, %s139
    %s140 = sphi 0, %s137
    %s141 = sphi 0, %s140
    %s157 = sphi 0, %s141
  $region4: #{tpu_custom_call.1} parent=0 // loop_header_branch
    %15 = sbr.rel (%p13) target = $region8
  $region5: #{tpu_custom_call.1} parent=0 // loop_body
    %s17 = ssub.s32 %s12, 1
    %s18 = ssub.s32 %s12, 2
    %s19 = sadd.s32 %s12, 1
    %s20 = ssub.s32 %s12, %s19
    %p21 = scmp.eq.s32.totalorder %s20, 0
    %s23 = sadd.s32 %s22, 1
    %s24 = scalar_select %p21, %s22, %s23
    %p27 = pneg %p21
    %p28 = scmp.eq.s32.totalorder %s12, 1
    %p29 = por %p27, %p28
    %p30 = scmp.ne.s32.totalorder %s22, %s25
    %p31 = scmp.eq.s32.totalorder %s12, 0
    %p32 = por %p30, %p31
    %p33 = scmp.ne.s32.totalorder %s22, %s25
    %p34 = scmp.eq.s32.totalorder %s17, 1
    %p35 = por %p33, %p34
    %p36 = scmp.ne.s32.totalorder %s25, %s26
    %p37 = scmp.eq.s32.totalorder %s17, 0
    %p38 = por %p36, %p37
    %p39 = scmp.ne.s32.totalorder %s25, %s26
    %p40 = scmp.eq.s32.totalorder %s18, 1
    %p41 = por %p39, %p40
    %p43 = scmp.ne.s32.totalorder %s26, %s42
    %p44 = scmp.eq.s32.totalorder %s18, 0
    %p45 = por %p43, %p44
    %s47 = sadd.s32 %s46, 1
    %p50 = scmp.eq.s32.totalorder %s12, 1
    %p51 = scmp.ne.s32.totalorder %s46, %s48
    %p52 = scmp.eq.s32.totalorder %s12, 0
    %p53 = por %p51, %p52
    %p54 = scmp.ne.s32.totalorder %s46, %s48
    %p55 = scmp.eq.s32.totalorder %s17, 1
    %p56 = por %p54, %p55
    %p57 = scmp.ne.s32.totalorder %s48, %s49
    %p58 = scmp.eq.s32.totalorder %s17, 0
    %p59 = por %p57, %p58
    %p60 = scmp.ne.s32.totalorder %s48, %s49
    %p61 = scmp.eq.s32.totalorder %s18, 1
    %p62 = por %p60, %p61
    %p64 = scmp.ne.s32.totalorder %s49, %s63
    %p65 = scmp.eq.s32.totalorder %s18, 0
    %p66 = por %p64, %p65
    %s68 = sadd.s32 %s67, 1
    %p71 = scmp.eq.s32.totalorder %s12, 1
    %p72 = scmp.ne.s32.totalorder %s67, %s69
    %p73 = scmp.eq.s32.totalorder %s12, 0
    %p74 = por %p72, %p73
    %p75 = scmp.ne.s32.totalorder %s67, %s69
    %p76 = scmp.eq.s32.totalorder %s17, 1
    %p77 = por %p75, %p76
    %p78 = scmp.ne.s32.totalorder %s69, %s70
    %p79 = scmp.eq.s32.totalorder %s17, 0
    %p80 = por %p78, %p79
    %p81 = scmp.ne.s32.totalorder %s69, %s70
    %p82 = scmp.eq.s32.totalorder %s18, 1
    %p83 = por %p81, %p82
    %p85 = scmp.ne.s32.totalorder %s70, %s84
    %p86 = scmp.eq.s32.totalorder %s18, 0
    %p87 = por %p85, %p86
    %s89 = sadd.s32 %s88, 1
    %p92 = scmp.eq.s32.totalorder %s12, 1
    %p93 = scmp.ne.s32.totalorder %s88, %s90
    %p94 = scmp.eq.s32.totalorder %s12, 0
    %p95 = por %p93, %p94
    %p96 = scmp.ne.s32.totalorder %s88, %s90
    %p97 = scmp.eq.s32.totalorder %s17, 1
    %p98 = por %p96, %p97
    %p99 = scmp.ne.s32.totalorder %s90, %s91
    %p100 = scmp.eq.s32.totalorder %s17, 0
    %p101 = por %p99, %p100
    %p102 = scmp.ne.s32.totalorder %s90, %s91
    %p103 = scmp.eq.s32.totalorder %s18, 1
    %p104 = por %p102, %p103
    %p106 = scmp.ne.s32.totalorder %s91, %s105
    %p107 = scmp.eq.s32.totalorder %s18, 0
    %p108 = por %p106, %p107
    %s109 = ssub.s32 %s12, %s19
    %p110 = scmp.eq.s32.totalorder %s109, 0
    %s112 = sadd.s32 %s111, 1
    %s113 = scalar_select %p110, %s111, %s112
    %p116 = pneg %p110
    %p117 = scmp.eq.s32.totalorder %s12, 1
    %p118 = por %p116, %p117
    %p119 = scmp.ne.s32.totalorder %s111, %s114
    %p120 = scmp.eq.s32.totalorder %s12, 0
    %p121 = por %p119, %p120
    %p122 = scmp.ne.s32.totalorder %s111, %s114
    %p123 = scmp.eq.s32.totalorder %s17, 1
    %p124 = por %p122, %p123
    %p125 = scmp.ne.s32.totalorder %s114, %s115
    %p126 = scmp.eq.s32.totalorder %s17, 0
    %p127 = por %p125, %p126
    %p128 = scmp.ne.s32.totalorder %s114, %s115
    %p129 = scmp.eq.s32.totalorder %s18, 1
    %p130 = por %p128, %p129
    %p132 = scmp.ne.s32.totalorder %s115, %s131
    %p133 = scmp.eq.s32.totalorder %s18, 0
    %p134 = por %p132, %p133
    %s135 = ssub.s32 %s12, %s19
    %p136 = scmp.eq.s32.totalorder %s135, 0
    %s138 = sadd.s32 %s137, 1
    %s139 = scalar_select %p136, %s137, %s138
    %p142 = pneg %p136
    %p143 = scmp.eq.s32.totalorder %s12, 1
    %p144 = por %p142, %p143
    %p145 = scmp.ne.s32.totalorder %s137, %s140
    %p146 = scmp.eq.s32.totalorder %s12, 0
    %p147 = por %p145, %p146
    %p148 = scmp.ne.s32.totalorder %s137, %s140
    %p149 = scmp.eq.s32.totalorder %s17, 1
    %p150 = por %p148, %p149
    %p151 = scmp.ne.s32.totalorder %s140, %s141
    %p152 = scmp.eq.s32.totalorder %s17, 0
    %p153 = por %p151, %p152
    %p154 = scmp.ne.s32.totalorder %s140, %s141
    %p155 = scmp.eq.s32.totalorder %s18, 1
    %p156 = por %p154, %p155
    %p158 = scmp.ne.s32.totalorder %s141, %s157
    %p159 = scmp.eq.s32.totalorder %s18, 0
    %p160 = por %p158, %p159
    %p161 = scmp.le.s32.totalorder 1, %s12
    %p162 = scmp.lt.s32.totalorder %s12, 3
    %p163 = pnand %p161, %p162
    %p164 = pneg %p163
    // Predicated region
    $region9: #{tpu_custom_call.1} parent=5 // pred_check
      _
    $region10: #{tpu_custom_call.1} parent=5 // pred_check_branch
      %166 = sbr.rel (%p163) target = $region12
    $region11: #{tpu_custom_call.1} parent=5 // pred_region
      %s167 = ssub.s32 %s12, 1
      // Predicated region
      $region13: #{tpu_custom_call.1} parent=11 // pred_check
        %p168 = pneg %p59
      $region14: #{tpu_custom_call.1} parent=11 // pred_check_branch
        %170 = sbr.rel (%p168) target = $region16
      $region15: #{tpu_custom_call.1} parent=11 // pred_region
        _
      $region16: #{tpu_custom_call.1} parent=11 // pred_fallthru
        _
      // Predicated region
      $region17: #{tpu_custom_call.1} parent=11 // pred_check
        %p171 = pneg %p80
      $region18: #{tpu_custom_call.1} parent=11 // pred_check_branch
        %173 = sbr.rel (%p171) target = $region20
      $region19: #{tpu_custom_call.1} parent=11 // pred_region
        _
      $region20: #{tpu_custom_call.1} parent=11 // pred_fallthru
        _
      // Predicated region
      $region21: #{tpu_custom_call.1} parent=11 // pred_check
        %p174 = pneg %p101
      $region22: #{tpu_custom_call.1} parent=11 // pred_check_branch
        %176 = sbr.rel (%p174) target = $region24
      $region23: #{tpu_custom_call.1} parent=11 // pred_region
        _
      $region24: #{tpu_custom_call.1} parent=11 // pred_fallthru
        _
    $region12: #{tpu_custom_call.1} parent=5 // pred_fallthru
      _
    %p177 = scmp.lt.s32.totalorder %s12, 2
    // Predicated region
    $region25: #{tpu_custom_call.1} parent=5 // pred_check
      %p178 = pneg %p177
    $region26: #{tpu_custom_call.1} parent=5 // pred_check_branch
      %180 = sbr.rel (%p178) target = $region28
    $region27: #{tpu_custom_call.1} parent=5 // pred_region
      // Predicated region
      $region29: #{tpu_custom_call.1} parent=27 // pred_check
        %p181 = pneg %p32
      $region30: #{tpu_custom_call.1} parent=27 // pred_check_branch
        %183 = sbr.rel (%p181) target = $region32
      $region31: #{tpu_custom_call.1} parent=27 // pred_region
        %s184 = smul.u32 32, %s12
        %p185 = scmp.lt.s32.totalorder %s184, 63
        %s186 = scalar_select %p185, %s184, 63
        %s187 = smul.addr %s186, 8
        %s188 = scalar_lea.vmem %s0, %s187
        %s189 = smul.u32 32, %s12
      $region32: #{tpu_custom_call.1} parent=27 // pred_fallthru
        _
    $region28: #{tpu_custom_call.1} parent=5 // pred_fallthru
      _
    %p190 = scmp.le.s32.totalorder 1, %s12
    %p191 = scmp.lt.s32.totalorder %s12, 3
    %p192 = pnand %p190, %p191
    %p193 = pneg %p192
    // Predicated region
    $region33: #{tpu_custom_call.1} parent=5 // pred_check
      _
    $region34: #{tpu_custom_call.1} parent=5 // pred_check_branch
      %195 = sbr.rel (%p192) target = $region36
    $region35: #{tpu_custom_call.1} parent=5 // pred_region
      %s196 = ssub.s32 %s12, 1
      %s197 = smul.u32 32, %s17
      %p198 = scmp.lt.s32.totalorder %s197, 63
      %s199 = scalar_select %p198, %s197, 63
      %s200 = smul.addr %s199, 8
      %s201 = scalar_lea.vmem %s0, %s200
      %p202 = pneg %p38
      %p203 = pneg %p35
      %p204 = pneg %p59
      %p205 = pneg %p56
      %p206 = pneg %p80
      %p207 = pneg %p77
      %p208 = pneg %p101
      %p209 = pneg %p98
      %p210 = pneg %p127
      %p211 = pneg %p124
      %s212 = smul.u32 32, %s17
      %p213 = scmp.lt.s32.totalorder %s212, 63
      %s214 = scalar_select %p213, %s212, 63
      %s215 = smul.addr %s214, 8
      %s216 = scalar_lea.vmem %s4, %s215
      %p217 = pneg %p153
      %p218 = pneg %p150
      %s219 = smul.u32 32, %s17
      %p220 = scmp.lt.s32.totalorder %s219, 63
      %s221 = scalar_select %p220, %s219, 63
      %s222 = smul.addr %s221, 8
      %s223 = scalar_lea.vmem %s5, %s222
      %s224 = smul.u32 32, %s17
      %p225 = scmp.lt.s32.totalorder %s224, 63
      %s226 = scalar_select %p225, %s224, 63
      %s227 = smul.addr %s226, 8
      %s228 = scalar_lea.vmem %s0, %s227
      %s229 = smul.u32 32, %s17
      %s230 = smul.u32 32, %s17
      %p231 = scmp.lt.s32.totalorder %s230, 63
      %s232 = scalar_select %p231, %s230, 63
      %s233 = smul.addr %s232, 8
      %s234 = scalar_lea.vmem %s4, %s233
      %s235 = smul.u32 32, %s17
      %s236 = smul.u32 32, %s17
      %p237 = scmp.lt.s32.totalorder %s236, 63
      %s238 = scalar_select %p237, %s236, 63
      %s239 = smul.addr %s238, 8
      %s240 = scalar_lea.vmem %s5, %s239
      %s241 = smul.u32 32, %s17
      %v242 = vld [vmem:[%s228] sm:$0xff]
      %v243 = vld [vmem:[%s228 + $0x8] sm:$0xff]
      %v244 = vld [vmem:[%s228 + $0x10] sm:$0xff]
      %v245 = vld [vmem:[%s228 + $0x18] sm:$0xff]
      %v246 = vld [vmem:[%s228 + $0x20] sm:$0xff]
      %v247 = vld [vmem:[%s228 + $0x28] sm:$0xff]
      %v248 = vld [vmem:[%s228 + $0x30] sm:$0xff]
      %v249 = vld [vmem:[%s228 + $0x38] sm:$0xff]
      %v250 = vld [vmem:[%s228 + $0x40] sm:$0xff]
      %v251 = vld [vmem:[%s228 + $0x48] sm:$0xff]
      %v252 = vld [vmem:[%s228 + $0x50] sm:$0xff]
      %v253 = vld [vmem:[%s228 + $0x58] sm:$0xff]
      %v254 = vld [vmem:[%s228 + $0x60] sm:$0xff]
      %v255 = vld [vmem:[%s228 + $0x68] sm:$0xff]
      %v256 = vld [vmem:[%s228 + $0x70] sm:$0xff]
      %v257 = vld [vmem:[%s228 + $0x78] sm:$0xff]
      %v258 = vld [vmem:[%s228 + $0x80] sm:$0xff]
      %v259 = vld [vmem:[%s228 + $0x88] sm:$0xff]
      %v260 = vld [vmem:[%s228 + $0x90] sm:$0xff]
      %v261 = vld [vmem:[%s228 + $0x98] sm:$0xff]
      %v262 = vld [vmem:[%s228 + $0xa0] sm:$0xff]
      %v263 = vld [vmem:[%s228 + $0xa8] sm:$0xff]
      %v264 = vld [vmem:[%s228 + $0xb0] sm:$0xff]
      %v265 = vld [vmem:[%s228 + $0xb8] sm:$0xff]
      %v266 = vld [vmem:[%s228 + $0xc0] sm:$0xff]
      %v267 = vld [vmem:[%s228 + $0xc8] sm:$0xff]
      %v268 = vld [vmem:[%s228 + $0xd0] sm:$0xff]
      %v269 = vld [vmem:[%s228 + $0xd8] sm:$0xff]
      %v270 = vld [vmem:[%s228 + $0xe0] sm:$0xff]
      %v271 = vld [vmem:[%s228 + $0xe8] sm:$0xff]
      %v272 = vld [vmem:[%s228 + $0xf0] sm:$0xff]
      %v273 = vld [vmem:[%s228 + $0xf8] sm:$0xff]
      %v274 = vld [vmem:[%s1] sm:$0xff]
      %v275 = vld [vmem:[%s1 + $0x8] sm:$0xff]
      %v276 = vld [vmem:[%s1 + $0x10] sm:$0xff]
      %v277 = vld [vmem:[%s1 + $0x18] sm:$0xff]
      %v278 = vld [vmem:[%s2] sm:$0x1]
      %v280 = vlaneseq
      %v281 = vshrl.u32 %v280, 7
      %v282 = vsub.s32 0, %v281
      %v283 = vrot.slane %v278, %v282
      %vm285 = vcmask 261120
      %v287 = vsel %vm285, %v242, 0
      %v290 = vsel %vm285, %v243, 0
      %v293 = vsel %vm285, %v244, 0
      %v296 = vsel %vm285, %v245, 0
      %v299 = vsel %vm285, %v246, 0
      %v302 = vsel %vm285, %v247, 0
      %v305 = vsel %vm285, %v248, 0
      %v308 = vsel %vm285, %v249, 0
      %v311 = vsel %vm285, %v250, 0
      %v314 = vsel %vm285, %v251, 0
      %v317 = vsel %vm285, %v252, 0
      %v320 = vsel %vm285, %v253, 0
      %v323 = vsel %vm285, %v254, 0
      %v326 = vsel %vm285, %v255, 0
      %v329 = vsel %vm285, %v256, 0
      %v332 = vsel %vm285, %v257, 0
      %v335 = vsel %vm285, %v258, 0
      %v338 = vsel %vm285, %v259, 0
      %v341 = vsel %vm285, %v260, 0
      %v344 = vsel %vm285, %v261, 0
      %v347 = vsel %vm285, %v262, 0
      %v350 = vsel %vm285, %v263, 0
      %v353 = vsel %vm285, %v264, 0
      %v356 = vsel %vm285, %v265, 0
      %v359 = vsel %vm285, %v266, 0
      %v362 = vsel %vm285, %v267, 0
      %v365 = vsel %vm285, %v268, 0
      %v368 = vsel %vm285, %v269, 0
      %v371 = vsel %vm285, %v270, 0
      %v374 = vsel %vm285, %v271, 0
      %v377 = vsel %vm285, %v272, 0
      %v380 = vsel %vm285, %v273, 0
      %382 = vmatprep.subr.mxu0 0.0
      %383 = vmatpush1.msra.mxu0 %v274
      %384 = vmatprep.subr.mxu0 0.0
      %385 = vmatpush1.msra.mxu0 %v275
      %386 = vmatprep.subr.mxu0 0.0
      %387 = vmatpush1.msra.mxu0 %v276
      %388 = vmatprep.subr.mxu0 0.0
      %389 = vmatpush1.msra.mxu0 %v277
      %390 = vmatprep.subr.mxu0 0.0
      %391 = vmatpush1.msra.mxu0 0.0
      %392 = vmatprep.subr.mxu0 0.0
      %393 = vmatpush1.msra.mxu0 0.0
      %394 = vmatprep.subr.mxu0 0.0
      %395 = vmatpush1.msra.mxu0 0.0
      %396 = vmatprep.subr.mxu0 0.0
      %397 = vmatpush1.msra.mxu0 0.0
      %398 = vmatprep.subr.mxu0 0.0
      %399 = vmatpush1.msra.mxu0 0.0
      %400 = vmatprep.subr.mxu0 0.0
      %401 = vmatpush1.msra.mxu0 0.0
      %402 = vmatprep.subr.mxu0 0.0
      %403 = vmatpush1.msra.mxu0 0.0
      %404 = vmatprep.subr.mxu0 0.0
      %405 = vmatpush1.msra.mxu0 0.0
      %406 = vmatprep.subr.mxu0 0.0
      %407 = vmatpush1.msra.mxu0 0.0
      %408 = vmatprep.subr.mxu0 0.0
      %409 = vmatpush1.msra.mxu0 0.0
      %410 = vmatprep.subr.mxu0 0.0
      %411 = vmatpush1.msra.mxu0 0.0
      %412 = vmatprep.subr.mxu0 0.0
      %413 = vmatpush1.msra.mxu0 0.0
      %414 = vmatprep.subr.mxu0 0.0
      %415 = vmatpush1.msra.mxu0 0.0
      %416 = vmatprep.subr.mxu0 0.0
      %417 = vmatpush1.msra.mxu0 0.0
      %418 = vmatprep.subr.mxu0 0.0
      %419 = vmatpush1.msra.mxu0 0.0
      %420 = vmatprep.subr.mxu0 0.0
      %421 = vmatpush1.msra.mxu0 0.0
      %422 = vmatprep.subr.mxu0 0.0
      %423 = vmatpush1.msra.mxu0 0.0
      %424 = vmatprep.subr.mxu0 0.0
      %425 = vmatpush1.msra.mxu0 0.0
      %426 = vmatprep.subr.mxu0 0.0
      %427 = vmatpush1.msra.mxu0 0.0
      %428 = vmatprep.subr.mxu0 0.0
      %429 = vmatpush1.msra.mxu0 0.0
      %430 = vmatprep.subr.mxu0 0.0
      %431 = vmatpush1.msra.mxu0 0.0
      %432 = vmatprep.subr.mxu0 0.0
      %433 = vmatpush1.msra.mxu0 0.0
      %434 = vmatprep.subr.mxu0 0.0
      %435 = vmatpush1.msra.mxu0 0.0
      %436 = vmatprep.subr.mxu0 0.0
      %437 = vmatpush1.msra.mxu0 0.0
      %438 = vmatprep.subr.mxu0 0.0
      %439 = vmatpush1.msra.mxu0 0.0
      %440 = vmatprep.subr.mxu0 0.0
      %441 = vmatpush1.msra.mxu0 0.0
      %442 = vmatprep.subr.mxu0 0.0
      %443 = vmatpush1.msra.mxu0 0.0
      %444 = vmatprep.subr.mxu0 0.0
      %445 = vmatpush1.msra.mxu0 0.0
      %446 = vmatprep.mubr.f32.mxu0 0.0
      %447 = vmatmul.mubr.f32.gmra.mrb[0].mxu0 %v287
      %v448 = vpop.f32.mrb[0].mxu0
      %v449 = vadd.f32 %v283, %v448
      %v450 = vpop.f32.mrb[0].mxu0
      %451 = vmatprep.mubr.f32.mxu0 0.0
      %452 = vmatmul.mubr.f32.gmra.mrb[0].mxu0 %v290
      %v453 = vpop.f32.mrb[0].mxu0
      %v454 = vadd.f32 %v283, %v453
      %v455 = vpop.f32.mrb[0].mxu0
      %456 = vmatprep.mubr.f32.mxu0 0.0
      %457 = vmatmul.mubr.f32.gmra.mrb[0].mxu0 %v293
      %v458 = vpop.f32.mrb[0].mxu0
      %v459 = vadd.f32 %v283, %v458
      %v460 = vpop.f32.mrb[0].mxu0
      %461 = vmatprep.mubr.f32.mxu0 0.0
      %462 = vmatmul.mubr.f32.gmra.mrb[0].mxu0 %v296
      %v463 = vpop.f32.mrb[0].mxu0
      %v464 = vadd.f32 %v283, %v463
      %v465 = vpop.f32.mrb[0].mxu0
      %466 = vmatprep.mubr.f32.mxu0 0.0
      %467 = vmatmul.mubr.f32.gmra.mrb[0].mxu0 %v299
      %v468 = vpop.f32.mrb[0].mxu0
      %v469 = vadd.f32 %v283, %v468
      %v470 = vpop.f32.mrb[0].mxu0
      %471 = vmatprep.mubr.f32.mxu0 0.0
      %472 = vmatmul.mubr.f32.gmra.mrb[0].mxu0 %v302
      %v473 = vpop.f32.mrb[0].mxu0
      %v474 = vadd.f32 %v283, %v473
      %v475 = vpop.f32.mrb[0].mxu0
      %476 = vmatprep.mubr.f32.mxu0 0.0
      %477 = vmatmul.mubr.f32.gmra.mrb[0].mxu0 %v305
      %v478 = vpop.f32.mrb[0].mxu0
      %v479 = vadd.f32 %v283, %v478
      %v480 = vpop.f32.mrb[0].mxu0
      %481 = vmatprep.mubr.f32.mxu0 0.0
      %482 = vmatmul.mubr.f32.gmra.mrb[0].mxu0 %v308
      %v483 = vpop.f32.mrb[0].mxu0
      %v484 = vadd.f32 %v283, %v483
      %v485 = vpop.f32.mrb[0].mxu0
      %486 = vmatprep.mubr.f32.mxu0 0.0
      %487 = vmatmul.mubr.f32.gmra.mrb[0].mxu0 %v311
      %v488 = vpop.f32.mrb[0].mxu0
      %v489 = vadd.f32 %v283, %v488
      %v490 = vpop.f32.mrb[0].mxu0
      %491 = vmatprep.mubr.f32.mxu0 0.0
      %492 = vmatmul.mubr.f32.gmra.mrb[0].mxu0 %v314
      %v493 = vpop.f32.mrb[0].mxu0
      %v494 = vadd.f32 %v283, %v493
      %v495 = vpop.f32.mrb[0].mxu0
      %496 = vmatprep.mubr.f32.mxu0 0.0
      %497 = vmatmul.mubr.f32.gmra.mrb[0].mxu0 %v317
      %v498 = vpop.f32.mrb[0].mxu0
      %v499 = vadd.f32 %v283, %v498
      %v500 = vpop.f32.mrb[0].mxu0
      %501 = vmatprep.mubr.f32.mxu0 0.0
      %502 = vmatmul.mubr.f32.gmra.mrb[0].mxu0 %v320
      %v503 = vpop.f32.mrb[0].mxu0
      %v504 = vadd.f32 %v283, %v503
      %v505 = vpop.f32.mrb[0].mxu0
      %506 = vmatprep.mubr.f32.mxu0 0.0
      %507 = vmatmul.mubr.f32.gmra.mrb[0].mxu0 %v323
      %v508 = vpop.f32.mrb[0].mxu0
      %v509 = vadd.f32 %v283, %v508
      %v510 = vpop.f32.mrb[0].mxu0
      %511 = vmatprep.mubr.f32.mxu0 0.0
      %512 = vmatmul.mubr.f32.gmra.mrb[0].mxu0 %v326
      %v513 = vpop.f32.mrb[0].mxu0
      %v514 = vadd.f32 %v283, %v513
      %v515 = vpop.f32.mrb[0].mxu0
      %516 = vmatprep.mubr.f32.mxu0 0.0
      %517 = vmatmul.mubr.f32.gmra.mrb[0].mxu0 %v329
      %v518 = vpop.f32.mrb[0].mxu0
      %v519 = vadd.f32 %v283, %v518
      %v520 = vpop.f32.mrb[0].mxu0
      %521 = vmatprep.mubr.f32.mxu0 0.0
      %522 = vmatmul.mubr.f32.gmra.mrb[0].mxu0 %v332
      %v523 = vpop.f32.mrb[0].mxu0
      %v524 = vadd.f32 %v283, %v523
      %v525 = vpop.f32.mrb[0].mxu0
      %526 = vmatprep.mubr.f32.mxu0 0.0
      %527 = vmatmul.mubr.f32.gmra.mrb[0].mxu0 %v335
      %v528 = vpop.f32.mrb[0].mxu0
      %v529 = vadd.f32 %v283, %v528
      %v530 = vpop.f32.mrb[0].mxu0
      %531 = vmatprep.mubr.f32.mxu0 0.0
      %532 = vmatmul.mubr.f32.gmra.mrb[0].mxu0 %v338
      %v533 = vpop.f32.mrb[0].mxu0
      %v534 = vadd.f32 %v283, %v533
      %v535 = vpop.f32.mrb[0].mxu0
      %536 = vmatprep.mubr.f32.mxu0 0.0
      %537 = vmatmul.mubr.f32.gmra.mrb[0].mxu0 %v341
      %v538 = vpop.f32.mrb[0].mxu0
      %v539 = vadd.f32 %v283, %v538
      %v540 = vpop.f32.mrb[0].mxu0
      %541 = vmatprep.mubr.f32.mxu0 0.0
      %542 = vmatmul.mubr.f32.gmra.mrb[0].mxu0 %v344
      %v543 = vpop.f32.mrb[0].mxu0
      %v544 = vadd.f32 %v283, %v543
      %v545 = vpop.f32.mrb[0].mxu0
      %546 = vmatprep.mubr.f32.mxu0 0.0
      %547 = vmatmul.mubr.f32.gmra.mrb[0].mxu0 %v347
      %v548 = vpop.f32.mrb[0].mxu0
      %v549 = vadd.f32 %v283, %v548
      %v550 = vpop.f32.mrb[0].mxu0
      %551 = vmatprep.mubr.f32.mxu0 0.0
      %552 = vmatmul.mubr.f32.gmra.mrb[0].mxu0 %v350
      %v553 = vpop.f32.mrb[0].mxu0
      %v554 = vadd.f32 %v283, %v553
      %v555 = vpop.f32.mrb[0].mxu0
      %556 = vmatprep.mubr.f32.mxu0 0.0
      %557 = vmatmul.mubr.f32.gmra.mrb[0].mxu0 %v353
      %v558 = vpop.f32.mrb[0].mxu0
      %v559 = vadd.f32 %v283, %v558
      %v560 = vpop.f32.mrb[0].mxu0
      %561 = vmatprep.mubr.f32.mxu0 0.0
      %562 = vmatmul.mubr.f32.gmra.mrb[0].mxu0 %v356
      %v563 = vpop.f32.mrb[0].mxu0
      %v564 = vadd.f32 %v283, %v563
      %v565 = vpop.f32.mrb[0].mxu0
      %566 = vmatprep.mubr.f32.mxu0 0.0
      %567 = vmatmul.mubr.f32.gmra.mrb[0].mxu0 %v359
      %v568 = vpop.f32.mrb[0].mxu0
      %v569 = vadd.f32 %v283, %v568
      %v570 = vpop.f32.mrb[0].mxu0
      %571 = vmatprep.mubr.f32.mxu0 0.0
      %572 = vmatmul.mubr.f32.gmra.mrb[0].mxu0 %v362
      %v573 = vpop.f32.mrb[0].mxu0
      %v574 = vadd.f32 %v283, %v573
      %v575 = vpop.f32.mrb[0].mxu0
      %576 = vmatprep.mubr.f32.mxu0 0.0
      %577 = vmatmul.mubr.f32.gmra.mrb[0].mxu0 %v365
      %v578 = vpop.f32.mrb[0].mxu0
      %v579 = vadd.f32 %v283, %v578
      %v580 = vpop.f32.mrb[0].mxu0
      %581 = vmatprep.mubr.f32.mxu0 0.0
      %582 = vmatmul.mubr.f32.gmra.mrb[0].mxu0 %v368
      %v583 = vpop.f32.mrb[0].mxu0
      %v584 = vadd.f32 %v283, %v583
      %v585 = vpop.f32.mrb[0].mxu0
      %586 = vmatprep.mubr.f32.mxu0 0.0
      %587 = vmatmul.mubr.f32.gmra.mrb[0].mxu0 %v371
      %v588 = vpop.f32.mrb[0].mxu0
      %v589 = vadd.f32 %v283, %v588
      %v590 = vpop.f32.mrb[0].mxu0
      %591 = vmatprep.mubr.f32.mxu0 0.0
      %592 = vmatmul.mubr.f32.gmra.mrb[0].mxu0 %v374
      %v593 = vpop.f32.mrb[0].mxu0
      %v594 = vadd.f32 %v283, %v593
      %v595 = vpop.f32.mrb[0].mxu0
      %596 = vmatprep.mubr.f32.mxu0 0.0
      %597 = vmatmul.mubr.f32.gmra.mrb[0].mxu0 %v377
      %v598 = vpop.f32.mrb[0].mxu0
      %v599 = vadd.f32 %v283, %v598
      %v600 = vpop.f32.mrb[0].mxu0
      %601 = vmatprep.mubr.f32.mxu0 0.0
      %602 = vmatmul.mubr.f32.gmra.mrb[0].mxu0 %v380
      %v603 = vpop.f32.mrb[0].mxu0
      %v604 = vadd.f32 %v283, %v603
      %v605 = vpop.f32.mrb[0].mxu0
      %606 = vdwg.mxu0
      %v607 = vtanh.pop %v449
      %v608 = vtanh.pop %v454
      %v609 = vtanh.pop %v459
      %v610 = vtanh.pop %v464
      %v611 = vtanh.pop %v469
      %v612 = vtanh.pop %v474
      %v613 = vtanh.pop %v479
      %v614 = vtanh.pop %v484
      %v615 = vtanh.pop %v489
      %v616 = vtanh.pop %v494
      %v617 = vtanh.pop %v499
      %v618 = vtanh.pop %v504
      %v619 = vtanh.pop %v509
      %v620 = vtanh.pop %v514
      %v621 = vtanh.pop %v519
      %v622 = vtanh.pop %v524
      %v623 = vtanh.pop %v529
      %v624 = vtanh.pop %v534
      %v625 = vtanh.pop %v539
      %v626 = vtanh.pop %v544
      %v627 = vtanh.pop %v549
      %v628 = vtanh.pop %v554
      %v629 = vtanh.pop %v559
      %v630 = vtanh.pop %v564
      %v631 = vtanh.pop %v569
      %v632 = vtanh.pop %v574
      %v633 = vtanh.pop %v579
      %v634 = vtanh.pop %v584
      %v635 = vtanh.pop %v589
      %v636 = vtanh.pop %v594
      %v637 = vtanh.pop %v599
      %v638 = vtanh.pop %v604
      %v639 = vld [vmem:[%s3] sm:$0x1]
      %v641 = vlaneseq
      %v642 = vshrl.u32 %v641, 7
      %v643 = vsub.s32 0, %v642
      %v644 = vrot.slane %v639, %v643
      %v646 = vmul.f32 %v607, %v644
      %v647 = vmul.f32 %v608, %v644
      %v648 = vmul.f32 %v609, %v644
      %v649 = vmul.f32 %v610, %v644
      %v650 = vmul.f32 %v611, %v644
      %v651 = vmul.f32 %v612, %v644
      %v652 = vmul.f32 %v613, %v644
      %v653 = vmul.f32 %v614, %v644
      %v654 = vmul.f32 %v615, %v644
      %v655 = vmul.f32 %v616, %v644
      %v656 = vmul.f32 %v617, %v644
      %v657 = vmul.f32 %v618, %v644
      %v658 = vmul.f32 %v619, %v644
      %v659 = vmul.f32 %v620, %v644
      %v660 = vmul.f32 %v621, %v644
      %v661 = vmul.f32 %v622, %v644
      %v662 = vmul.f32 %v623, %v644
      %v663 = vmul.f32 %v624, %v644
      %v664 = vmul.f32 %v625, %v644
      %v665 = vmul.f32 %v626, %v644
      %v666 = vmul.f32 %v627, %v644
      %v667 = vmul.f32 %v628, %v644
      %v668 = vmul.f32 %v629, %v644
      %v669 = vmul.f32 %v630, %v644
      %v670 = vmul.f32 %v631, %v644
      %v671 = vmul.f32 %v632, %v644
      %v672 = vmul.f32 %v633, %v644
      %v673 = vmul.f32 %v634, %v644
      %v674 = vmul.f32 %v635, %v644
      %v675 = vmul.f32 %v636, %v644
      %v676 = vmul.f32 %v637, %v644
      %v677 = vmul.f32 %v638, %v644
      %v678 = vsel %vm285, %v646, 0.0
      %679 = vadd.xlane.f32.xlu0 %v678
      %v680 = vpop.xlane.xlu0 %679
      %v681 = vsel %vm285, %v647, 0.0
      %682 = vadd.xlane.f32.xlu0 %v681
      %v683 = vpop.xlane.xlu0 %682
      %v684 = vsel %vm285, %v648, 0.0
      %685 = vadd.xlane.f32.xlu0 %v684
      %v686 = vpop.xlane.xlu0 %685
      %v687 = vsel %vm285, %v649, 0.0
      %688 = vadd.xlane.f32.xlu0 %v687
      %v689 = vpop.xlane.xlu0 %688
      %v690 = vsel %vm285, %v650, 0.0
      %691 = vadd.xlane.f32.xlu0 %v690
      %v692 = vpop.xlane.xlu0 %691
      %v693 = vsel %vm285, %v651, 0.0
      %694 = vadd.xlane.f32.xlu0 %v693
      %v695 = vpop.xlane.xlu0 %694
      %v696 = vsel %vm285, %v652, 0.0
      %697 = vadd.xlane.f32.xlu0 %v696
      %v698 = vpop.xlane.xlu0 %697
      %v699 = vsel %vm285, %v653, 0.0
      %700 = vadd.xlane.f32.xlu0 %v699
      %v701 = vpop.xlane.xlu0 %700
      %v702 = vsel %vm285, %v654, 0.0
      %703 = vadd.xlane.f32.xlu0 %v702
      %v704 = vpop.xlane.xlu0 %703
      %v705 = vsel %vm285, %v655, 0.0
      %706 = vadd.xlane.f32.xlu0 %v705
      %v707 = vpop.xlane.xlu0 %706
      %v708 = vsel %vm285, %v656, 0.0
      %709 = vadd.xlane.f32.xlu0 %v708
      %v710 = vpop.xlane.xlu0 %709
      %v711 = vsel %vm285, %v657, 0.0
      %712 = vadd.xlane.f32.xlu0 %v711
      %v713 = vpop.xlane.xlu0 %712
      %v714 = vsel %vm285, %v658, 0.0
      %715 = vadd.xlane.f32.xlu0 %v714
      %v716 = vpop.xlane.xlu0 %715
      %v717 = vsel %vm285, %v659, 0.0
      %718 = vadd.xlane.f32.xlu0 %v717
      %v719 = vpop.xlane.xlu0 %718
      %v720 = vsel %vm285, %v660, 0.0
      %721 = vadd.xlane.f32.xlu0 %v720
      %v722 = vpop.xlane.xlu0 %721
      %v723 = vsel %vm285, %v661, 0.0
      %724 = vadd.xlane.f32.xlu0 %v723
      %v725 = vpop.xlane.xlu0 %724
      %v726 = vsel %vm285, %v662, 0.0
      %727 = vadd.xlane.f32.xlu0 %v726
      %v728 = vpop.xlane.xlu0 %727
      %v729 = vsel %vm285, %v663, 0.0
      %730 = vadd.xlane.f32.xlu0 %v729
      %v731 = vpop.xlane.xlu0 %730
      %v732 = vsel %vm285, %v664, 0.0
      %733 = vadd.xlane.f32.xlu0 %v732
      %v734 = vpop.xlane.xlu0 %733
      %v735 = vsel %vm285, %v665, 0.0
      %736 = vadd.xlane.f32.xlu0 %v735
      %v737 = vpop.xlane.xlu0 %736
      %v738 = vsel %vm285, %v666, 0.0
      %739 = vadd.xlane.f32.xlu0 %v738
      %v740 = vpop.xlane.xlu0 %739
      %v741 = vsel %vm285, %v667, 0.0
      %742 = vadd.xlane.f32.xlu0 %v741
      %v743 = vpop.xlane.xlu0 %742
      %v744 = vsel %vm285, %v668, 0.0
      %745 = vadd.xlane.f32.xlu0 %v744
      %v746 = vpop.xlane.xlu0 %745
      %v747 = vsel %vm285, %v669, 0.0
      %748 = vadd.xlane.f32.xlu0 %v747
      %v749 = vpop.xlane.xlu0 %748
      %v750 = vsel %vm285, %v670, 0.0
      %751 = vadd.xlane.f32.xlu0 %v750
      %v752 = vpop.xlane.xlu0 %751
      %v753 = vsel %vm285, %v671, 0.0
      %754 = vadd.xlane.f32.xlu0 %v753
      %v755 = vpop.xlane.xlu0 %754
      %v756 = vsel %vm285, %v672, 0.0
      %757 = vadd.xlane.f32.xlu0 %v756
      %v758 = vpop.xlane.xlu0 %757
      %v759 = vsel %vm285, %v673, 0.0
      %760 = vadd.xlane.f32.xlu0 %v759
      %v761 = vpop.xlane.xlu0 %760
      %v762 = vsel %vm285, %v674, 0.0
      %763 = vadd.xlane.f32.xlu0 %v762
      %v764 = vpop.xlane.xlu0 %763
      %v765 = vsel %vm285, %v675, 0.0
      %766 = vadd.xlane.f32.xlu0 %v765
      %v767 = vpop.xlane.xlu0 %766
      %v768 = vsel %vm285, %v676, 0.0
      %769 = vadd.xlane.f32.xlu0 %v768
      %v770 = vpop.xlane.xlu0 %769
      %v771 = vsel %vm285, %v677, 0.0
      %772 = vadd.xlane.f32.xlu0 %v771
      %v773 = vpop.xlane.xlu0 %772
      %v774 = vrot.slane %v680, 4
      %v775 = vmax.f32 %v680, %v774
      %v776 = vrot.slane %v775, 2
      %v777 = vmax.f32 %v775, %v776
      %v778 = vrot.slane %v777, 1
      %v779 = vmax.f32 %v777, %v778
      %v780 = vrot.slane %v683, 4
      %v781 = vmax.f32 %v683, %v780
      %v782 = vrot.slane %v781, 2
      %v783 = vmax.f32 %v781, %v782
      %v784 = vrot.slane %v783, 1
      %v785 = vmax.f32 %v783, %v784
      %v786 = vrot.slane %v686, 4
      %v787 = vmax.f32 %v686, %v786
      %v788 = vrot.slane %v787, 2
      %v789 = vmax.f32 %v787, %v788
      %v790 = vrot.slane %v789, 1
      %v791 = vmax.f32 %v789, %v790
      %v792 = vrot.slane %v689, 4
      %v793 = vmax.f32 %v689, %v792
      %v794 = vrot.slane %v793, 2
      %v795 = vmax.f32 %v793, %v794
      %v796 = vrot.slane %v795, 1
      %v797 = vmax.f32 %v795, %v796
      %v798 = vrot.slane %v692, 4
      %v799 = vmax.f32 %v692, %v798
      %v800 = vrot.slane %v799, 2
      %v801 = vmax.f32 %v799, %v800
      %v802 = vrot.slane %v801, 1
      %v803 = vmax.f32 %v801, %v802
      %v804 = vrot.slane %v695, 4
      %v805 = vmax.f32 %v695, %v804
      %v806 = vrot.slane %v805, 2
      %v807 = vmax.f32 %v805, %v806
      %v808 = vrot.slane %v807, 1
      %v809 = vmax.f32 %v807, %v808
      %v810 = vrot.slane %v698, 4
      %v811 = vmax.f32 %v698, %v810
      %v812 = vrot.slane %v811, 2
      %v813 = vmax.f32 %v811, %v812
      %v814 = vrot.slane %v813, 1
      %v815 = vmax.f32 %v813, %v814
      %v816 = vrot.slane %v701, 4
      %v817 = vmax.f32 %v701, %v816
      %v818 = vrot.slane %v817, 2
      %v819 = vmax.f32 %v817, %v818
      %v820 = vrot.slane %v819, 1
      %v821 = vmax.f32 %v819, %v820
      %v822 = vrot.slane %v704, 4
      %v823 = vmax.f32 %v704, %v822
      %v824 = vrot.slane %v823, 2
      %v825 = vmax.f32 %v823, %v824
      %v826 = vrot.slane %v825, 1
      %v827 = vmax.f32 %v825, %v826
      %v828 = vrot.slane %v707, 4
      %v829 = vmax.f32 %v707, %v828
      %v830 = vrot.slane %v829, 2
      %v831 = vmax.f32 %v829, %v830
      %v832 = vrot.slane %v831, 1
      %v833 = vmax.f32 %v831, %v832
      %v834 = vrot.slane %v710, 4
      %v835 = vmax.f32 %v710, %v834
      %v836 = vrot.slane %v835, 2
      %v837 = vmax.f32 %v835, %v836
      %v838 = vrot.slane %v837, 1
      %v839 = vmax.f32 %v837, %v838
      %v840 = vrot.slane %v713, 4
      %v841 = vmax.f32 %v713, %v840
      %v842 = vrot.slane %v841, 2
      %v843 = vmax.f32 %v841, %v842
      %v844 = vrot.slane %v843, 1
      %v845 = vmax.f32 %v843, %v844
      %v846 = vrot.slane %v716, 4
      %v847 = vmax.f32 %v716, %v846
      %v848 = vrot.slane %v847, 2
      %v849 = vmax.f32 %v847, %v848
      %v850 = vrot.slane %v849, 1
      %v851 = vmax.f32 %v849, %v850
      %v852 = vrot.slane %v719, 4
      %v853 = vmax.f32 %v719, %v852
      %v854 = vrot.slane %v853, 2
      %v855 = vmax.f32 %v853, %v854
      %v856 = vrot.slane %v855, 1
      %v857 = vmax.f32 %v855, %v856
      %v858 = vrot.slane %v722, 4
      %v859 = vmax.f32 %v722, %v858
      %v860 = vrot.slane %v859, 2
      %v861 = vmax.f32 %v859, %v860
      %v862 = vrot.slane %v861, 1
      %v863 = vmax.f32 %v861, %v862
      %v864 = vrot.slane %v725, 4
      %v865 = vmax.f32 %v725, %v864
      %v866 = vrot.slane %v865, 2
      %v867 = vmax.f32 %v865, %v866
      %v868 = vrot.slane %v867, 1
      %v869 = vmax.f32 %v867, %v868
      %v870 = vrot.slane %v728, 4
      %v871 = vmax.f32 %v728, %v870
      %v872 = vrot.slane %v871, 2
      %v873 = vmax.f32 %v871, %v872
      %v874 = vrot.slane %v873, 1
      %v875 = vmax.f32 %v873, %v874
      %v876 = vrot.slane %v731, 4
      %v877 = vmax.f32 %v731, %v876
      %v878 = vrot.slane %v877, 2
      %v879 = vmax.f32 %v877, %v878
      %v880 = vrot.slane %v879, 1
      %v881 = vmax.f32 %v879, %v880
      %v882 = vrot.slane %v734, 4
      %v883 = vmax.f32 %v734, %v882
      %v884 = vrot.slane %v883, 2
      %v885 = vmax.f32 %v883, %v884
      %v886 = vrot.slane %v885, 1
      %v887 = vmax.f32 %v885, %v886
      %v888 = vrot.slane %v737, 4
      %v889 = vmax.f32 %v737, %v888
      %v890 = vrot.slane %v889, 2
      %v891 = vmax.f32 %v889, %v890
      %v892 = vrot.slane %v891, 1
      %v893 = vmax.f32 %v891, %v892
      %v894 = vrot.slane %v740, 4
      %v895 = vmax.f32 %v740, %v894
      %v896 = vrot.slane %v895, 2
      %v897 = vmax.f32 %v895, %v896
      %v898 = vrot.slane %v897, 1
      %v899 = vmax.f32 %v897, %v898
      %v900 = vrot.slane %v743, 4
      %v901 = vmax.f32 %v743, %v900
      %v902 = vrot.slane %v901, 2
      %v903 = vmax.f32 %v901, %v902
      %v904 = vrot.slane %v903, 1
      %v905 = vmax.f32 %v903, %v904
      %v906 = vrot.slane %v746, 4
      %v907 = vmax.f32 %v746, %v906
      %v908 = vrot.slane %v907, 2
      %v909 = vmax.f32 %v907, %v908
      %v910 = vrot.slane %v909, 1
      %v911 = vmax.f32 %v909, %v910
      %v912 = vrot.slane %v749, 4
      %v913 = vmax.f32 %v749, %v912
      %v914 = vrot.slane %v913, 2
      %v915 = vmax.f32 %v913, %v914
      %v916 = vrot.slane %v915, 1
      %v917 = vmax.f32 %v915, %v916
      %v918 = vrot.slane %v752, 4
      %v919 = vmax.f32 %v752, %v918
      %v920 = vrot.slane %v919, 2
      %v921 = vmax.f32 %v919, %v920
      %v922 = vrot.slane %v921, 1
      %v923 = vmax.f32 %v921, %v922
      %v924 = vrot.slane %v755, 4
      %v925 = vmax.f32 %v755, %v924
      %v926 = vrot.slane %v925, 2
      %v927 = vmax.f32 %v925, %v926
      %v928 = vrot.slane %v927, 1
      %v929 = vmax.f32 %v927, %v928
      %v930 = vrot.slane %v758, 4
      %v931 = vmax.f32 %v758, %v930
      %v932 = vrot.slane %v931, 2
      %v933 = vmax.f32 %v931, %v932
      %v934 = vrot.slane %v933, 1
      %v935 = vmax.f32 %v933, %v934
      %v936 = vrot.slane %v761, 4
      %v937 = vmax.f32 %v761, %v936
      %v938 = vrot.slane %v937, 2
      %v939 = vmax.f32 %v937, %v938
      %v940 = vrot.slane %v939, 1
      %v941 = vmax.f32 %v939, %v940
      %v942 = vrot.slane %v764, 4
      %v943 = vmax.f32 %v764, %v942
      %v944 = vrot.slane %v943, 2
      %v945 = vmax.f32 %v943, %v944
      %v946 = vrot.slane %v945, 1
      %v947 = vmax.f32 %v945, %v946
      %v948 = vrot.slane %v767, 4
      %v949 = vmax.f32 %v767, %v948
      %v950 = vrot.slane %v949, 2
      %v951 = vmax.f32 %v949, %v950
      %v952 = vrot.slane %v951, 1
      %v953 = vmax.f32 %v951, %v952
      %v954 = vrot.slane %v770, 4
      %v955 = vmax.f32 %v770, %v954
      %v956 = vrot.slane %v955, 2
      %v957 = vmax.f32 %v955, %v956
      %v958 = vrot.slane %v957, 1
      %v959 = vmax.f32 %v957, %v958
      %v960 = vrot.slane %v773, 4
      %v961 = vmax.f32 %v773, %v960
      %v962 = vrot.slane %v961, 2
      %v963 = vmax.f32 %v961, %v962
      %v964 = vrot.slane %v963, 1
      %v965 = vmax.f32 %v963, %v964
      %v966 = vsub.f32 %v680, %v779
      %v967 = vsub.f32 %v683, %v785
      %v968 = vsub.f32 %v686, %v791
      %v969 = vsub.f32 %v689, %v797
      %v970 = vsub.f32 %v692, %v803
      %v971 = vsub.f32 %v695, %v809
      %v972 = vsub.f32 %v698, %v815
      %v973 = vsub.f32 %v701, %v821
      %v974 = vsub.f32 %v704, %v827
      %v975 = vsub.f32 %v707, %v833
      %v976 = vsub.f32 %v710, %v839
      %v977 = vsub.f32 %v713, %v845
      %v978 = vsub.f32 %v716, %v851
      %v979 = vsub.f32 %v719, %v857
      %v980 = vsub.f32 %v722, %v863
      %v981 = vsub.f32 %v725, %v869
      %v982 = vsub.f32 %v728, %v875
      %v983 = vsub.f32 %v731, %v881
      %v984 = vsub.f32 %v734, %v887
      %v985 = vsub.f32 %v737, %v893
      %v986 = vsub.f32 %v740, %v899
      %v987 = vsub.f32 %v743, %v905
      %v988 = vsub.f32 %v746, %v911
      %v989 = vsub.f32 %v749, %v917
      %v990 = vsub.f32 %v752, %v923
      %v991 = vsub.f32 %v755, %v929
      %v992 = vsub.f32 %v758, %v935
      %v993 = vsub.f32 %v761, %v941
      %v994 = vsub.f32 %v764, %v947
      %v995 = vsub.f32 %v767, %v953
      %v996 = vsub.f32 %v770, %v959
      %v997 = vsub.f32 %v773, %v965
      %v998 = vmul.f32 %v966, 1.442695
      %v999 = vpow.pop %v998
      %v1000 = vmul.f32 %v967, 1.442695
      %v1001 = vpow.pop %v1000
      %v1002 = vmul.f32 %v968, 1.442695
      %v1003 = vpow.pop %v1002
      %v1004 = vmul.f32 %v969, 1.442695
      %v1005 = vpow.pop %v1004
      %v1006 = vmul.f32 %v970, 1.442695
      %v1007 = vpow.pop %v1006
      %v1008 = vmul.f32 %v971, 1.442695
      %v1009 = vpow.pop %v1008
      %v1010 = vmul.f32 %v972, 1.442695
      %v1011 = vpow.pop %v1010
      %v1012 = vmul.f32 %v973, 1.442695
      %v1013 = vpow.pop %v1012
      %v1014 = vmul.f32 %v974, 1.442695
      %v1015 = vpow.pop %v1014
      %v1016 = vmul.f32 %v975, 1.442695
      %v1017 = vpow.pop %v1016
      %v1018 = vmul.f32 %v976, 1.442695
      %v1019 = vpow.pop %v1018
      %v1020 = vmul.f32 %v977, 1.442695
      %v1021 = vpow.pop %v1020
      %v1022 = vmul.f32 %v978, 1.442695
      %v1023 = vpow.pop %v1022
      %v1024 = vmul.f32 %v979, 1.442695
      %v1025 = vpow.pop %v1024
      %v1026 = vmul.f32 %v980, 1.442695
      %v1027 = vpow.pop %v1026
      %v1028 = vmul.f32 %v981, 1.442695
      %v1029 = vpow.pop %v1028
      %v1030 = vmul.f32 %v982, 1.442695
      %v1031 = vpow.pop %v1030
      %v1032 = vmul.f32 %v983, 1.442695
      %v1033 = vpow.pop %v1032
      %v1034 = vmul.f32 %v984, 1.442695
      %v1035 = vpow.pop %v1034
      %v1036 = vmul.f32 %v985, 1.442695
      %v1037 = vpow.pop %v1036
      %v1038 = vmul.f32 %v986, 1.442695
      %v1039 = vpow.pop %v1038
      %v1040 = vmul.f32 %v987, 1.442695
      %v1041 = vpow.pop %v1040
      %v1042 = vmul.f32 %v988, 1.442695
      %v1043 = vpow.pop %v1042
      %v1044 = vmul.f32 %v989, 1.442695
      %v1045 = vpow.pop %v1044
      %v1046 = vmul.f32 %v990, 1.442695
      %v1047 = vpow.pop %v1046
      %v1048 = vmul.f32 %v991, 1.442695
      %v1049 = vpow.pop %v1048
      %v1050 = vmul.f32 %v992, 1.442695
      %v1051 = vpow.pop %v1050
      %v1052 = vmul.f32 %v993, 1.442695
      %v1053 = vpow.pop %v1052
      %v1054 = vmul.f32 %v994, 1.442695
      %v1055 = vpow.pop %v1054
      %v1056 = vmul.f32 %v995, 1.442695
      %v1057 = vpow.pop %v1056
      %v1058 = vmul.f32 %v996, 1.442695
      %v1059 = vpow.pop %v1058
      %v1060 = vmul.f32 %v997, 1.442695
      %v1061 = vpow.pop %v1060
      %v1062 = vrot.slane %v999, 4
      %v1063 = vadd.f32 %v999, %v1062
      %v1064 = vrot.slane %v1063, 2
      %v1065 = vadd.f32 %v1063, %v1064
      %v1066 = vrot.slane %v1065, 1
      %v1067 = vadd.f32 %v1065, %v1066
      %v1068 = vrot.slane %v1001, 4
      %v1069 = vadd.f32 %v1001, %v1068
      %v1070 = vrot.slane %v1069, 2
      %v1071 = vadd.f32 %v1069, %v1070
      %v1072 = vrot.slane %v1071, 1
      %v1073 = vadd.f32 %v1071, %v1072
      %v1074 = vrot.slane %v1003, 4
      %v1075 = vadd.f32 %v1003, %v1074
      %v1076 = vrot.slane %v1075, 2
      %v1077 = vadd.f32 %v1075, %v1076
      %v1078 = vrot.slane %v1077, 1
      %v1079 = vadd.f32 %v1077, %v1078
      %v1080 = vrot.slane %v1005, 4
      %v1081 = vadd.f32 %v1005, %v1080
      %v1082 = vrot.slane %v1081, 2
      %v1083 = vadd.f32 %v1081, %v1082
      %v1084 = vrot.slane %v1083, 1
      %v1085 = vadd.f32 %v1083, %v1084
      %v1086 = vrot.slane %v1007, 4
      %v1087 = vadd.f32 %v1007, %v1086
      %v1088 = vrot.slane %v1087, 2
      %v1089 = vadd.f32 %v1087, %v1088
      %v1090 = vrot.slane %v1089, 1
      %v1091 = vadd.f32 %v1089, %v1090
      %v1092 = vrot.slane %v1009, 4
      %v1093 = vadd.f32 %v1009, %v1092
      %v1094 = vrot.slane %v1093, 2
      %v1095 = vadd.f32 %v1093, %v1094
      %v1096 = vrot.slane %v1095, 1
      %v1097 = vadd.f32 %v1095, %v1096
      %v1098 = vrot.slane %v1011, 4
      %v1099 = vadd.f32 %v1011, %v1098
      %v1100 = vrot.slane %v1099, 2
      %v1101 = vadd.f32 %v1099, %v1100
      %v1102 = vrot.slane %v1101, 1
      %v1103 = vadd.f32 %v1101, %v1102
      %v1104 = vrot.slane %v1013, 4
      %v1105 = vadd.f32 %v1013, %v1104
      %v1106 = vrot.slane %v1105, 2
      %v1107 = vadd.f32 %v1105, %v1106
      %v1108 = vrot.slane %v1107, 1
      %v1109 = vadd.f32 %v1107, %v1108
      %v1110 = vrot.slane %v1015, 4
      %v1111 = vadd.f32 %v1015, %v1110
      %v1112 = vrot.slane %v1111, 2
      %v1113 = vadd.f32 %v1111, %v1112
      %v1114 = vrot.slane %v1113, 1
      %v1115 = vadd.f32 %v1113, %v1114
      %v1116 = vrot.slane %v1017, 4
      %v1117 = vadd.f32 %v1017, %v1116
      %v1118 = vrot.slane %v1117, 2
      %v1119 = vadd.f32 %v1117, %v1118
      %v1120 = vrot.slane %v1119, 1
      %v1121 = vadd.f32 %v1119, %v1120
      %v1122 = vrot.slane %v1019, 4
      %v1123 = vadd.f32 %v1019, %v1122
      %v1124 = vrot.slane %v1123, 2
      %v1125 = vadd.f32 %v1123, %v1124
      %v1126 = vrot.slane %v1125, 1
      %v1127 = vadd.f32 %v1125, %v1126
      %v1128 = vrot.slane %v1021, 4
      %v1129 = vadd.f32 %v1021, %v1128
      %v1130 = vrot.slane %v1129, 2
      %v1131 = vadd.f32 %v1129, %v1130
      %v1132 = vrot.slane %v1131, 1
      %v1133 = vadd.f32 %v1131, %v1132
      %v1134 = vrot.slane %v1023, 4
      %v1135 = vadd.f32 %v1023, %v1134
      %v1136 = vrot.slane %v1135, 2
      %v1137 = vadd.f32 %v1135, %v1136
      %v1138 = vrot.slane %v1137, 1
      %v1139 = vadd.f32 %v1137, %v1138
      %v1140 = vrot.slane %v1025, 4
      %v1141 = vadd.f32 %v1025, %v1140
      %v1142 = vrot.slane %v1141, 2
      %v1143 = vadd.f32 %v1141, %v1142
      %v1144 = vrot.slane %v1143, 1
      %v1145 = vadd.f32 %v1143, %v1144
      %v1146 = vrot.slane %v1027, 4
      %v1147 = vadd.f32 %v1027, %v1146
      %v1148 = vrot.slane %v1147, 2
      %v1149 = vadd.f32 %v1147, %v1148
      %v1150 = vrot.slane %v1149, 1
      %v1151 = vadd.f32 %v1149, %v1150
      %v1152 = vrot.slane %v1029, 4
      %v1153 = vadd.f32 %v1029, %v1152
      %v1154 = vrot.slane %v1153, 2
      %v1155 = vadd.f32 %v1153, %v1154
      %v1156 = vrot.slane %v1155, 1
      %v1157 = vadd.f32 %v1155, %v1156
      %v1158 = vrot.slane %v1031, 4
      %v1159 = vadd.f32 %v1031, %v1158
      %v1160 = vrot.slane %v1159, 2
      %v1161 = vadd.f32 %v1159, %v1160
      %v1162 = vrot.slane %v1161, 1
      %v1163 = vadd.f32 %v1161, %v1162
      %v1164 = vrot.slane %v1033, 4
      %v1165 = vadd.f32 %v1033, %v1164
      %v1166 = vrot.slane %v1165, 2
      %v1167 = vadd.f32 %v1165, %v1166
      %v1168 = vrot.slane %v1167, 1
      %v1169 = vadd.f32 %v1167, %v1168
      %v1170 = vrot.slane %v1035, 4
      %v1171 = vadd.f32 %v1035, %v1170
      %v1172 = vrot.slane %v1171, 2
      %v1173 = vadd.f32 %v1171, %v1172
      %v1174 = vrot.slane %v1173, 1
      %v1175 = vadd.f32 %v1173, %v1174
      %v1176 = vrot.slane %v1037, 4
      %v1177 = vadd.f32 %v1037, %v1176
      %v1178 = vrot.slane %v1177, 2
      %v1179 = vadd.f32 %v1177, %v1178
      %v1180 = vrot.slane %v1179, 1
      %v1181 = vadd.f32 %v1179, %v1180
      %v1182 = vrot.slane %v1039, 4
      %v1183 = vadd.f32 %v1039, %v1182
      %v1184 = vrot.slane %v1183, 2
      %v1185 = vadd.f32 %v1183, %v1184
      %v1186 = vrot.slane %v1185, 1
      %v1187 = vadd.f32 %v1185, %v1186
      %v1188 = vrot.slane %v1041, 4
      %v1189 = vadd.f32 %v1041, %v1188
      %v1190 = vrot.slane %v1189, 2
      %v1191 = vadd.f32 %v1189, %v1190
      %v1192 = vrot.slane %v1191, 1
      %v1193 = vadd.f32 %v1191, %v1192
      %v1194 = vrot.slane %v1043, 4
      %v1195 = vadd.f32 %v1043, %v1194
      %v1196 = vrot.slane %v1195, 2
      %v1197 = vadd.f32 %v1195, %v1196
      %v1198 = vrot.slane %v1197, 1
      %v1199 = vadd.f32 %v1197, %v1198
      %v1200 = vrot.slane %v1045, 4
      %v1201 = vadd.f32 %v1045, %v1200
      %v1202 = vrot.slane %v1201, 2
      %v1203 = vadd.f32 %v1201, %v1202
      %v1204 = vrot.slane %v1203, 1
      %v1205 = vadd.f32 %v1203, %v1204
      %v1206 = vrot.slane %v1047, 4
      %v1207 = vadd.f32 %v1047, %v1206
      %v1208 = vrot.slane %v1207, 2
      %v1209 = vadd.f32 %v1207, %v1208
      %v1210 = vrot.slane %v1209, 1
      %v1211 = vadd.f32 %v1209, %v1210
      %v1212 = vrot.slane %v1049, 4
      %v1213 = vadd.f32 %v1049, %v1212
      %v1214 = vrot.slane %v1213, 2
      %v1215 = vadd.f32 %v1213, %v1214
      %v1216 = vrot.slane %v1215, 1
      %v1217 = vadd.f32 %v1215, %v1216
      %v1218 = vrot.slane %v1051, 4
      %v1219 = vadd.f32 %v1051, %v1218
      %v1220 = vrot.slane %v1219, 2
      %v1221 = vadd.f32 %v1219, %v1220
      %v1222 = vrot.slane %v1221, 1
      %v1223 = vadd.f32 %v1221, %v1222
      %v1224 = vrot.slane %v1053, 4
      %v1225 = vadd.f32 %v1053, %v1224
      %v1226 = vrot.slane %v1225, 2
      %v1227 = vadd.f32 %v1225, %v1226
      %v1228 = vrot.slane %v1227, 1
      %v1229 = vadd.f32 %v1227, %v1228
      %v1230 = vrot.slane %v1055, 4
      %v1231 = vadd.f32 %v1055, %v1230
      %v1232 = vrot.slane %v1231, 2
      %v1233 = vadd.f32 %v1231, %v1232
      %v1234 = vrot.slane %v1233, 1
      %v1235 = vadd.f32 %v1233, %v1234
      %v1236 = vrot.slane %v1057, 4
      %v1237 = vadd.f32 %v1057, %v1236
      %v1238 = vrot.slane %v1237, 2
      %v1239 = vadd.f32 %v1237, %v1238
      %v1240 = vrot.slane %v1239, 1
      %v1241 = vadd.f32 %v1239, %v1240
      %v1242 = vrot.slane %v1059, 4
      %v1243 = vadd.f32 %v1059, %v1242
      %v1244 = vrot.slane %v1243, 2
      %v1245 = vadd.f32 %v1243, %v1244
      %v1246 = vrot.slane %v1245, 1
      %v1247 = vadd.f32 %v1245, %v1246
      %v1248 = vrot.slane %v1061, 4
      %v1249 = vadd.f32 %v1061, %v1248
      %v1250 = vrot.slane %v1249, 2
      %v1251 = vadd.f32 %v1249, %v1250
      %v1252 = vrot.slane %v1251, 1
      %v1253 = vadd.f32 %v1251, %v1252
      %v1254 = vrcp.pop %v1067
      %v1255 = vrcp.pop %v1073
      %v1256 = vrcp.pop %v1079
      %v1257 = vrcp.pop %v1085
      %v1258 = vrcp.pop %v1091
      %v1259 = vrcp.pop %v1097
      %v1260 = vrcp.pop %v1103
      %v1261 = vrcp.pop %v1109
      %v1262 = vrcp.pop %v1115
      %v1263 = vrcp.pop %v1121
      %v1264 = vrcp.pop %v1127
      %v1265 = vrcp.pop %v1133
      %v1266 = vrcp.pop %v1139
      %v1267 = vrcp.pop %v1145
      %v1268 = vrcp.pop %v1151
      %v1269 = vrcp.pop %v1157
      %v1270 = vrcp.pop %v1163
      %v1271 = vrcp.pop %v1169
      %v1272 = vrcp.pop %v1175
      %v1273 = vrcp.pop %v1181
      %v1274 = vrcp.pop %v1187
      %v1275 = vrcp.pop %v1193
      %v1276 = vrcp.pop %v1199
      %v1277 = vrcp.pop %v1205
      %v1278 = vrcp.pop %v1211
      %v1279 = vrcp.pop %v1217
      %v1280 = vrcp.pop %v1223
      %v1281 = vrcp.pop %v1229
      %v1282 = vrcp.pop %v1235
      %v1283 = vrcp.pop %v1241
      %v1284 = vrcp.pop %v1247
      %v1285 = vrcp.pop %v1253
      %v1286 = vmul.f32 %v999, %v1254
      %v1287 = vmul.f32 %v1001, %v1255
      %v1288 = vmul.f32 %v1003, %v1256
      %v1289 = vmul.f32 %v1005, %v1257
      %v1290 = vmul.f32 %v1007, %v1258
      %v1291 = vmul.f32 %v1009, %v1259
      %v1292 = vmul.f32 %v1011, %v1260
      %v1293 = vmul.f32 %v1013, %v1261
      %v1294 = vmul.f32 %v1015, %v1262
      %v1295 = vmul.f32 %v1017, %v1263
      %v1296 = vmul.f32 %v1019, %v1264
      %v1297 = vmul.f32 %v1021, %v1265
      %v1298 = vmul.f32 %v1023, %v1266
      %v1299 = vmul.f32 %v1025, %v1267
      %v1300 = vmul.f32 %v1027, %v1268
      %v1301 = vmul.f32 %v1029, %v1269
      %v1302 = vmul.f32 %v1031, %v1270
      %v1303 = vmul.f32 %v1033, %v1271
      %v1304 = vmul.f32 %v1035, %v1272
      %v1305 = vmul.f32 %v1037, %v1273
      %v1306 = vmul.f32 %v1039, %v1274
      %v1307 = vmul.f32 %v1041, %v1275
      %v1308 = vmul.f32 %v1043, %v1276
      %v1309 = vmul.f32 %v1045, %v1277
      %v1310 = vmul.f32 %v1047, %v1278
      %v1311 = vmul.f32 %v1049, %v1279
      %v1312 = vmul.f32 %v1051, %v1280
      %v1313 = vmul.f32 %v1053, %v1281
      %v1314 = vmul.f32 %v1055, %v1282
      %v1315 = vmul.f32 %v1057, %v1283
      %v1316 = vmul.f32 %v1059, %v1284
      %v1317 = vmul.f32 %v1061, %v1285
      %vm1318 = vcmask 7168
      %1319 = vst.msk [vmem:[%s240] sm:$0xff] %vm1318, %v1286
      %1320 = vst.msk [vmem:[%s240 + $0x8] sm:$0xff] %vm1318, %v1287
      %1321 = vst.msk [vmem:[%s240 + $0x10] sm:$0xff] %vm1318, %v1288
      %1322 = vst.msk [vmem:[%s240 + $0x18] sm:$0xff] %vm1318, %v1289
      %1323 = vst.msk [vmem:[%s240 + $0x20] sm:$0xff] %vm1318, %v1290
      %1324 = vst.msk [vmem:[%s240 + $0x28] sm:$0xff] %vm1318, %v1291
      %1325 = vst.msk [vmem:[%s240 + $0x30] sm:$0xff] %vm1318, %v1292
      %1326 = vst.msk [vmem:[%s240 + $0x38] sm:$0xff] %vm1318, %v1293
      %1327 = vst.msk [vmem:[%s240 + $0x40] sm:$0xff] %vm1318, %v1294
      %1328 = vst.msk [vmem:[%s240 + $0x48] sm:$0xff] %vm1318, %v1295
      %1329 = vst.msk [vmem:[%s240 + $0x50] sm:$0xff] %vm1318, %v1296
      %1330 = vst.msk [vmem:[%s240 + $0x58] sm:$0xff] %vm1318, %v1297
      %1331 = vst.msk [vmem:[%s240 + $0x60] sm:$0xff] %vm1318, %v1298
      %1332 = vst.msk [vmem:[%s240 + $0x68] sm:$0xff] %vm1318, %v1299
      %1333 = vst.msk [vmem:[%s240 + $0x70] sm:$0xff] %vm1318, %v1300
      %1334 = vst.msk [vmem:[%s240 + $0x78] sm:$0xff] %vm1318, %v1301
      %1335 = vst.msk [vmem:[%s240 + $0x80] sm:$0xff] %vm1318, %v1302
      %1336 = vst.msk [vmem:[%s240 + $0x88] sm:$0xff] %vm1318, %v1303
      %1337 = vst.msk [vmem:[%s240 + $0x90] sm:$0xff] %vm1318, %v1304
      %1338 = vst.msk [vmem:[%s240 + $0x98] sm:$0xff] %vm1318, %v1305
      %1339 = vst.msk [vmem:[%s240 + $0xa0] sm:$0xff] %vm1318, %v1306
      %1340 = vst.msk [vmem:[%s240 + $0xa8] sm:$0xff] %vm1318, %v1307
      %1341 = vst.msk [vmem:[%s240 + $0xb0] sm:$0xff] %vm1318, %v1308
      %1342 = vst.msk [vmem:[%s240 + $0xb8] sm:$0xff] %vm1318, %v1309
      %1343 = vst.msk [vmem:[%s240 + $0xc0] sm:$0xff] %vm1318, %v1310
      %1344 = vst.msk [vmem:[%s240 + $0xc8] sm:$0xff] %vm1318, %v1311
      %1345 = vst.msk [vmem:[%s240 + $0xd0] sm:$0xff] %vm1318, %v1312
      %1346 = vst.msk [vmem:[%s240 + $0xd8] sm:$0xff] %vm1318, %v1313
      %1347 = vst.msk [vmem:[%s240 + $0xe0] sm:$0xff] %vm1318, %v1314
      %1348 = vst.msk [vmem:[%s240 + $0xe8] sm:$0xff] %vm1318, %v1315
      %1349 = vst.msk [vmem:[%s240 + $0xf0] sm:$0xff] %vm1318, %v1316
      %1350 = vst.msk [vmem:[%s240 + $0xf8] sm:$0xff] %vm1318, %v1317
      %v1351 = vmul.f32 %v1286, %v242
      %v1352 = vmul.f32 %v1287, %v243
      %v1353 = vmul.f32 %v1288, %v244
      %v1354 = vmul.f32 %v1289, %v245
      %v1355 = vmul.f32 %v1290, %v246
      %v1356 = vmul.f32 %v1291, %v247
      %v1357 = vmul.f32 %v1292, %v248
      %v1358 = vmul.f32 %v1293, %v249
      %v1359 = vmul.f32 %v1294, %v250
      %v1360 = vmul.f32 %v1295, %v251
      %v1361 = vmul.f32 %v1296, %v252
      %v1362 = vmul.f32 %v1297, %v253
      %v1363 = vmul.f32 %v1298, %v254
      %v1364 = vmul.f32 %v1299, %v255
      %v1365 = vmul.f32 %v1300, %v256
      %v1366 = vmul.f32 %v1301, %v257
      %v1367 = vmul.f32 %v1302, %v258
      %v1368 = vmul.f32 %v1303, %v259
      %v1369 = vmul.f32 %v1304, %v260
      %v1370 = vmul.f32 %v1305, %v261
      %v1371 = vmul.f32 %v1306, %v262
      %v1372 = vmul.f32 %v1307, %v263
      %v1373 = vmul.f32 %v1308, %v264
      %v1374 = vmul.f32 %v1309, %v265
      %v1375 = vmul.f32 %v1310, %v266
      %v1376 = vmul.f32 %v1311, %v267
      %v1377 = vmul.f32 %v1312, %v268
      %v1378 = vmul.f32 %v1313, %v269
      %v1379 = vmul.f32 %v1314, %v270
      %v1380 = vmul.f32 %v1315, %v271
      %v1381 = vmul.f32 %v1316, %v272
      %v1382 = vmul.f32 %v1317, %v273
      %1383 = vst.msk [vmem:[%s234] sm:$0xff] %vm285, %v1351
      %1384 = vst.msk [vmem:[%s234 + $0x8] sm:$0xff] %vm285, %v1352
      %1385 = vst.msk [vmem:[%s234 + $0x10] sm:$0xff] %vm285, %v1353
      %1386 = vst.msk [vmem:[%s234 + $0x18] sm:$0xff] %vm285, %v1354
      %1387 = vst.msk [vmem:[%s234 + $0x20] sm:$0xff] %vm285, %v1355
      %1388 = vst.msk [vmem:[%s234 + $0x28] sm:$0xff] %vm285, %v1356
      %1389 = vst.msk [vmem:[%s234 + $0x30] sm:$0xff] %vm285, %v1357
      %1390 = vst.msk [vmem:[%s234 + $0x38] sm:$0xff] %vm285, %v1358
      %1391 = vst.msk [vmem:[%s234 + $0x40] sm:$0xff] %vm285, %v1359
      %1392 = vst.msk [vmem:[%s234 + $0x48] sm:$0xff] %vm285, %v1360
      %1393 = vst.msk [vmem:[%s234 + $0x50] sm:$0xff] %vm285, %v1361
      %1394 = vst.msk [vmem:[%s234 + $0x58] sm:$0xff] %vm285, %v1362
      %1395 = vst.msk [vmem:[%s234 + $0x60] sm:$0xff] %vm285, %v1363
      %1396 = vst.msk [vmem:[%s234 + $0x68] sm:$0xff] %vm285, %v1364
      %1397 = vst.msk [vmem:[%s234 + $0x70] sm:$0xff] %vm285, %v1365
      %1398 = vst.msk [vmem:[%s234 + $0x78] sm:$0xff] %vm285, %v1366
      %1399 = vst.msk [vmem:[%s234 + $0x80] sm:$0xff] %vm285, %v1367
      %1400 = vst.msk [vmem:[%s234 + $0x88] sm:$0xff] %vm285, %v1368
      %1401 = vst.msk [vmem:[%s234 + $0x90] sm:$0xff] %vm285, %v1369
      %1402 = vst.msk [vmem:[%s234 + $0x98] sm:$0xff] %vm285, %v1370
      %1403 = vst.msk [vmem:[%s234 + $0xa0] sm:$0xff] %vm285, %v1371
      %1404 = vst.msk [vmem:[%s234 + $0xa8] sm:$0xff] %vm285, %v1372
      %1405 = vst.msk [vmem:[%s234 + $0xb0] sm:$0xff] %vm285, %v1373
      %1406 = vst.msk [vmem:[%s234 + $0xb8] sm:$0xff] %vm285, %v1374
      %1407 = vst.msk [vmem:[%s234 + $0xc0] sm:$0xff] %vm285, %v1375
      %1408 = vst.msk [vmem:[%s234 + $0xc8] sm:$0xff] %vm285, %v1376
      %1409 = vst.msk [vmem:[%s234 + $0xd0] sm:$0xff] %vm285, %v1377
      %1410 = vst.msk [vmem:[%s234 + $0xd8] sm:$0xff] %vm285, %v1378
      %1411 = vst.msk [vmem:[%s234 + $0xe0] sm:$0xff] %vm285, %v1379
      %1412 = vst.msk [vmem:[%s234 + $0xe8] sm:$0xff] %vm285, %v1380
      %1413 = vst.msk [vmem:[%s234 + $0xf0] sm:$0xff] %vm285, %v1381
      %1414 = vst.msk [vmem:[%s234 + $0xf8] sm:$0xff] %vm285, %v1382
      %s1415 = smul.u32 32, %s17
      %p1416 = scmp.lt.s32.totalorder %s1415, 63
      %s1417 = scalar_select %p1416, %s1415, 63
      %s1418 = smul.addr %s1417, 8
      %s1419 = scalar_lea.vmem %s4, %s1418
      %s1420 = smul.u32 32, %s17
      %p1421 = scmp.lt.s32.totalorder %s1420, 63
      %s1422 = scalar_select %p1421, %s1420, 63
      %s1423 = smul.addr %s1422, 8
      %s1424 = scalar_lea.vmem %s5, %s1423
      // Predicated region
      $region37: #{tpu_custom_call.1} parent=35 // pred_check
        %p1425 = pneg %p124
      $region38: #{tpu_custom_call.1} parent=35 // pred_check_branch
        %1427 = sbr.rel (%p1425) target = $region40
      $region39: #{tpu_custom_call.1} parent=35 // pred_region
        %s1428 = smul.u32 32, %s17
      $region40: #{tpu_custom_call.1} parent=35 // pred_fallthru
        _
      // Predicated region
      $region41: #{tpu_custom_call.1} parent=35 // pred_check
        %p1429 = pneg %p150
      $region42: #{tpu_custom_call.1} parent=35 // pred_check_branch
        %1431 = sbr.rel (%p1429) target = $region44
      $region43: #{tpu_custom_call.1} parent=35 // pred_region
        %s1432 = smul.u32 32, %s17
      $region44: #{tpu_custom_call.1} parent=35 // pred_fallthru
        _
    $region36: #{tpu_custom_call.1} parent=5 // pred_fallthru
      _
    %p1433 = scmp.le.s32.totalorder 2, %s12
    // Predicated region
    $region45: #{tpu_custom_call.1} parent=5 // pred_check
      %p1434 = pneg %p1433
    $region46: #{tpu_custom_call.1} parent=5 // pred_check_branch
      %1436 = sbr.rel (%p1434) target = $region48
    $region47: #{tpu_custom_call.1} parent=5 // pred_region
      %s1437 = ssub.s32 %s12, 2
      // Predicated region
      $region49: #{tpu_custom_call.1} parent=47 // pred_check
        %p1438 = pneg %p130
      $region50: #{tpu_custom_call.1} parent=47 // pred_check_branch
        %1440 = sbr.rel (%p1438) target = $region52
      $region51: #{tpu_custom_call.1} parent=47 // pred_region
        %s1441 = smul.u32 32, %s18
        %p1442 = scmp.lt.s32.totalorder %s1441, 63
        %s1443 = scalar_select %p1442, %s1441, 63
        %s1444 = smul.addr %s1443, 8
        %s1445 = scalar_lea.vmem %s4, %s1444
      $region52: #{tpu_custom_call.1} parent=47 // pred_fallthru
        _
      // Predicated region
      $region53: #{tpu_custom_call.1} parent=47 // pred_check
        %p1446 = pneg %p156
      $region54: #{tpu_custom_call.1} parent=47 // pred_check_branch
        %1448 = sbr.rel (%p1446) target = $region56
      $region55: #{tpu_custom_call.1} parent=47 // pred_region
        %s1449 = smul.u32 32, %s18
        %p1450 = scmp.lt.s32.totalorder %s1449, 63
        %s1451 = scalar_select %p1450, %s1449, 63
        %s1452 = smul.addr %s1451, 8
        %s1453 = scalar_lea.vmem %s5, %s1452
      $region56: #{tpu_custom_call.1} parent=47 // pred_fallthru
        _
    $region48: #{tpu_custom_call.1} parent=5 // pred_fallthru
      _
  $region6: #{tpu_custom_call.1} parent=0 // loop_footer
    %s16 = sadd.s32 1, %s12
  $region7: #{tpu_custom_call.1} parent=0 // loop_footer_branch
    %11 = sbr.rel target = $region3
  $region8: #{tpu_custom_call.1} parent=0 // loop_exit
    _

</llo_original>
